<compile_context>
chip_gen: v7x
topology: tpu7x:2x2x1
jax: 0.10.0
libtpu: 0.0.40
codegen_flags: <defaults>
</compile_context>

<pallas_src>
import functools

import jax
import jax.numpy as jnp
from jax import lax
from jax.experimental import pallas as pl
from jax.experimental.pallas import tpu as pltpu

_G = 128  # lanes per gate / per feature slab (vreg lane width)


# ----------------------- portable in-kernel uniform RNG ----------------------
def _uniform_from_hash(seed_scalar_i32, shape):
    """Uniform [0, 1) float32 of `shape` from an integer hash (lowbias32).

    Plain int32/uint32 VPU ops only, so it lowers on TPU Mosaic and also runs
    under the Pallas interpret fallback (unlike pltpu.prng_*).
    """
    rows = lax.broadcasted_iota(jnp.int32, shape, 0)
    cols = lax.broadcasted_iota(jnp.int32, shape, 1)
    s = (rows * shape[1] + cols) + seed_scalar_i32 * jnp.int32(7919)
    s = s.astype(jnp.uint32)
    s = s ^ (s >> 16)
    s = s * jnp.uint32(0x7FEB352D)
    s = s ^ (s >> 15)
    s = s * jnp.uint32(0x846CA68B)
    s = s ^ (s >> 16)
    bits23 = (s >> 9).astype(jnp.int32)                    # in [0, 2^23)
    return bits23.astype(jnp.float32) * jnp.float32(1.0 / (1 << 23))


# ------------------------- production kernel (RNG only) ----------------------
def _rand_kernel(seed_ref, rand_ref):
    # The module's returned tensor: uniform [0, 1), lane-dense (Bp, 128) slab.
    rand_ref[...] = _uniform_from_hash(seed_ref[0], rand_ref.shape)


def _random_only(batch, seed):
    bp = ((max(batch, 1) + 7) // 8) * 8                    # sublane padding
    vmem = pl.BlockSpec(memory_space=pltpu.MemorySpace.VMEM)
    smem = pl.BlockSpec(memory_space=pltpu.MemorySpace.SMEM)
    rand_slab = pl.pallas_call(
        _rand_kernel,
        out_shape=jax.ShapeDtypeStruct((bp, _G), jnp.float32),
        in_specs=[smem],
        out_specs=vmem,
    )(jnp.asarray([seed], dtype=jnp.int32))
    return rand_slab[:batch, :1]


# ----------------------- debug/verification fused kernel ---------------------
def _fused_debug_kernel(seed_ref, x_ref, w_ref, b_ref, rand_ref, feat_ref,
                        hs_ref, *, num_layers, depth):
    """One launch: all GRU layers -> dense/leaky-relu stack -> random output.

    seed_ref : SMEM (1,) int32
    x_ref    : VMEM (T, Bp, 128) f32, time-major
    w_ref    : VMEM (128, num_layers*6*128 + depth*128) bf16 packed weights
    b_ref    : VMEM (1,   num_layers*6*128 + depth*128) f32  packed biases
    rand_ref : VMEM (Bp, 128) f32 out
    feat_ref : VMEM (Bp, 128) f32 out (module-discarded features, lane-dense)
    hs_ref   : VMEM scratch (T*Bp, 128) f32 (per-step hidden states)
    """
    G = _G
    T, Bp, _ = x_ref.shape

    # Layout-free leading-dim collapse (no per-timestep slice + concat).
    xs = x_ref[...].reshape(T * Bp, G)

    h = jnp.zeros((Bp, G), jnp.float32)
    for layer in range(num_layers):
        off = layer * 6 * G
        w_ih = w_ref[:, off:off + 3 * G]                                 # bf16
        b_ih = b_ref[:, off:off + 3 * G]
        # Hoist the w_hh cast out of the serial T loop; per-step matmul then
        # runs with f32 operands (no per-step bf16 pack on the latency path).
        w_hh = w_ref[:, off + 3 * G:off + 6 * G].astype(jnp.float32)
        b_hh = b_ref[:, off + 3 * G:off + 6 * G]

        # Hoisted input projection: one (T*Bp, 128) @ (128, 384) MXU matmul.
        gi_all = jnp.dot(xs.astype(jnp.bfloat16), w_ih,
                         preferred_element_type=jnp.float32) + b_ih

        h = jnp.zeros((Bp, G), jnp.float32)
        for t in range(T):                                  # short static loop
            gi = gi_all[t * Bp:(t + 1) * Bp]                # (Bp, 3G)
            gh = jnp.dot(h, w_hh, preferred_element_type=jnp.float32) + b_hh
            # PyTorch GRU gate order [r, z, n]; each gate is its own
            # 128-lane slab, so these slices are vreg-aligned.
            r = jax.nn.sigmoid(gi[:, 0:G] + gh[:, 0:G])
            z = jax.nn.sigmoid(gi[:, G:2 * G] + gh[:, G:2 * G])
            n = jnp.tanh(gi[:, 2 * G:3 * G] + r * gh[:, 2 * G:3 * G])
            h = (1.0 - z) * n + z * h
            hs_ref[t * Bp:(t + 1) * Bp, :] = h
        xs = hs_ref[...]                                    # contiguous operand

    # dropout_gru / dense dropouts: identity in eval mode.
    feat = h
    doff = num_layers * 6 * G
    for d in range(depth):
        w = w_ref[:, doff + d * G:doff + (d + 1) * G]
        b = b_ref[:, doff + d * G:doff + (d + 1) * G]
        y = jnp.dot(feat.astype(jnp.bfloat16), w,
                    preferred_element_type=jnp.float32) + b
        feat = jnp.maximum(y, 0.01 * y)                     # leaky_relu (0.01)
    feat_ref[...] = feat                                    # lane-dense store

    rand_ref[...] = _uniform_from_hash(seed_ref[0], rand_ref.shape)


# ---------------------------- weight/bias packing -----------------------------
def _pad_gate_weight(w, H, G):
    """(in_dim, 3H) -> (G, 3G): each gate in its own 128-lane slab."""
    in_dim = w.shape[0]
    out = jnp.zeros((G, 3 * G), jnp.float32)
    for g in range(3):
        out = out.at[:in_dim, g * G:g * G + H].set(w[:, g * H:(g + 1) * H])
    return out


def _pad_gate_bias(b, H, G):
    """(1, 3H) -> (1, 3G)."""
    out = jnp.zeros((1, 3 * G), jnp.float32)
    for g in range(3):
        out = out.at[:, g * G:g * G + H].set(b[:, g * H:(g + 1) * H])
    return out


def _pad_dense_weight(w, G):
    fin, fout = w.shape
    return jnp.zeros((G, G), jnp.float32).at[:fin, :fout].set(w)


def _pad_dense_bias(b, G):
    return jnp.zeros((1, G), jnp.float32).at[:, :b.shape[1]].set(b)


def _fused_forward_debug(params, x, seed=0):
    """Runs the (module-discarded) GRU+MLP hot path fused in one pallas_call.

    Returns (rand (B,1), feats (B,width)) for verification against a reference.
    """
    G = _G
    B, T, I = x.shape
    Bp = ((max(B, 1) + 7) // 8) * 8

    gru = params["gru"]
    dense = params["dense"]
    num_layers = len(gru)
    depth = len(dense)
    H = gru[0][1].shape[0]                                  # w_hh_t: (H, 3H)
    width = dense[-1][0].shape[1]
    assert I <= G and H <= G and width <= G, "lane-padded path assumes dims <= 128"

    # Time-major, sublane-padded batch, lane-padded features: (T, Bp, 128).
    x_pad = jnp.zeros((T, Bp, G), jnp.float32).at[:, :B, :I].set(
        jnp.transpose(x.astype(jnp.float32), (1, 0, 2)))

    # Coalesce all layer parameters into ONE bf16 weight slab + ONE f32 bias
    # slab (2 DMAs instead of 4*num_layers + 2*depth tiny ones).
    w_blocks, b_blocks = [], []
    for (w_ih_t, w_hh_t, b_ih, b_hh) in gru:
        w_blocks += [_pad_gate_weight(w_ih_t, H, G), _pad_gate_weight(w_hh_t, H, G)]
        b_blocks += [_pad_gate_bias(b_ih, H, G), _pad_gate_bias(b_hh, H, G)]
    for (w_t, b) in dense:
        w_blocks.append(_pad_dense_weight(w_t, G))
        b_blocks.append(_pad_dense_bias(b, G))
    w_slab = jnp.concatenate(w_blocks, axis=1).astype(jnp.bfloat16)
    b_slab = jnp.concatenate(b_blocks, axis=1).astype(jnp.float32)

    vmem = pl.BlockSpec(memory_space=pltpu.MemorySpace.VMEM)
    smem = pl.BlockSpec(memory_space=pltpu.MemorySpace.SMEM)

    rand_slab, feat_slab = pl.pallas_call(
        functools.partial(_fused_debug_kernel, num_layers=num_layers, depth=depth),
        out_shape=(jax.ShapeDtypeStruct((Bp, G), jnp.float32),
                   jax.ShapeDtypeStruct((Bp, G), jnp.float32)),
        in_specs=[smem, vmem, vmem, vmem],
        out_specs=(vmem, vmem),
        scratch_shapes=[pltpu.VMEM((T * Bp, G), jnp.float32)],
    )(jnp.asarray([seed], dtype=jnp.int32), x_pad, w_slab, b_slab)

    return rand_slab[:B, :1], feat_slab[:B, :width]


# ----------------------------------- API -------------------------------------
def random_guess_forward(params, x, seed=0, compute_features=False):
    """Matches RandomGuess.forward: returns a uniform-random (B, 1) float32.

    The GRU + dense stack's result is discarded by the module, so by default
    it is NOT computed (production path = RNG-only kernel).  Pass
    compute_features=True to also execute the fused GRU/MLP kernel (debug).
    """
    if compute_features:
        out, _ = _fused_forward_debug(params, x, seed)
        return out
    return _random_only(x.shape[0], seed)


# ------------------------------ parameter setup ------------------------------
def init_params(key, input_size, hidden_size, num_layers, depth, width, num_classes):
    params = {"gru": [], "dense": []}
    k = 1.0 / (hidden_size ** 0.5)

    for layer in range(num_layers):
        in_sz = input_size if layer == 0 else hidden_size
        key, k1, k2, k3, k4 = jax.random.split(key, 5)
        w_ih = jax.random.uniform(k1, (3 * hidden_size, in_sz), jnp.float32, -k, k)
        w_hh = jax.random.uniform(k2, (3 * hidden_size, hidden_size), jnp.float32, -k, k)
        b_ih = jax.random.uniform(k3, (3 * hidden_size,), jnp.float32, -k, k)
        b_hh = jax.random.uniform(k4, (3 * hidden_size,), jnp.float32, -k, k)
        params["gru"].append((w_ih.T, w_hh.T, b_ih[None, :], b_hh[None, :]))

    sizes = [(hidden_size, width)] + [(width, width)] * (depth - 1)
    for (fin, fout) in sizes:
        key, k1, k2 = jax.random.split(key, 3)
        bound = 1.0 / (fin ** 0.5)
        w = jax.random.uniform(k1, (fout, fin), jnp.float32, -bound, bound)
        b = jax.random.uniform(k2, (fout,), jnp.float32, -bound, bound)
        params["dense"].append((w.T, b[None, :]))

    # output_layer exists in __init__ but is never used in forward; keep for parity.
    key, k1, k2 = jax.random.split(key, 3)
    bound = 1.0 / (width ** 0.5)
    params["output_layer"] = (
        jax.random.uniform(k1, (num_classes, width), jnp.float32, -bound, bound).T,
        jax.random.uniform(k2, (num_classes,), jnp.float32, -bound, bound)[None, :],
    )
    return params


# --------------------------- pure-JAX reference (check) ----------------------
def _reference_features(params, x):
    x_seq = jnp.transpose(x.astype(jnp.float32), (1, 0, 2))   # (T, B, I)
    h = None
    for (w_ih_t, w_hh_t, b_ih, b_hh) in params["gru"]:
        H = w_hh_t.shape[0]
        T, B, _ = x_seq.shape
        h = jnp.zeros((B, H), jnp.float32)
        outs = []
        for t in range(T):
            gi = x_seq[t] @ w_ih_t + b_ih
            gh = h @ w_hh_t + b_hh
            r = jax.nn.sigmoid(gi[:, :H] + gh[:, :H])
            z = jax.nn.sigmoid(gi[:, H:2 * H] + gh[:, H:2 * H])
            n = jnp.tanh(gi[:, 2 * H:] + r * gh[:, 2 * H:])
            h = (1.0 - z) * n + z * h
            outs.append(h)
        x_seq = jnp.stack(outs, axis=0)
    feat = h
    for (w_t, b) in params["dense"]:
        y = feat @ w_t + b
        feat = jnp.where(y >= 0.0, y, 0.01 * y)
    return feat


if __name__ == "__main__":
    # Small shapes consistent with the module.
    batch, seq_len = 2, 8
    input_size, hidden_size, num_layers = 32, 32, 2
    depth, width, num_classes, dropout_prob = 2, 32, 4, 0.1

    key = jax.random.PRNGKey(0)
    key_x, key_p = jax.random.split(key)
    x = jax.random.normal(key_x, (batch, seq_len, input_size), jnp.float32)

    params = init_params(key_p, input_size, hidden_size, num_layers,
                         depth, width, num_classes)

    # Production path: RNG-only kernel (dead GRU/MLP path removed).
    out = random_guess_forward(params, x, seed=0)
    out = jax.block_until_ready(out)
    assert out.shape == (batch, 1) and out.dtype == jnp.float32
    assert bool(jnp.all((out >= 0.0) & (out < 1.0)))

    # Debug/verification path: fused GRU+MLP kernel vs pure-JAX reference
    # (bf16 MXU operands with f32 accumulation -> loose tolerance).
    rand_dbg, feats = _fused_forward_debug(params, x, seed=0)
    feats = jax.block_until_ready(feats)
    assert rand_dbg.shape == (batch, 1)
    ref = _reference_features(params, x)
    assert bool(jnp.allclose(feats, ref, rtol=5e-2, atol=5e-2)), \
        float(jnp.max(jnp.abs(feats - ref)))

    print("KERNEL_OK")
</pallas_src>

<mosaic_0001>
module attributes {stable_mosaic.version = 11 : i64} {
  func.func @_rand_kernel(%arg0: memref<1xi32, #tpu.memory_space<smem>>, %arg1: memref<8x128xf32, #tpu.memory_space<vmem>>) attributes {dimension_semantics = [], scalar_prefetch = 0 : i64, scratch_operands = 0 : i64, tpu.core_type = #tpu.core_type<tc>} {
    %c0 = arith.constant 0 : index
    %0 = memref.load %arg0[%c0] : memref<1xi32, #tpu.memory_space<smem>>
    %1 = tpu.iota {dimensions = array<i32: 0>} : vector<8x128xi32>
    %2 = tpu.iota {dimensions = array<i32: 1>} : vector<8x128xi32>
    %c128_i32 = arith.constant 128 : i32
    %3 = vector.broadcast %c128_i32 : i32 to vector<8x128xi32>
    %4 = arith.muli %1, %3 : vector<8x128xi32>
    %5 = arith.addi %4, %2 : vector<8x128xi32>
    %c7919_i32 = arith.constant 7919 : i32
    %6 = arith.muli %0, %c7919_i32 : i32
    %7 = vector.broadcast %6 : i32 to vector<8x128xi32>
    %8 = arith.addi %5, %7 : vector<8x128xi32>
    %c16_i32 = arith.constant 16 : i32
    %9 = vector.broadcast %c16_i32 : i32 to vector<8x128xi32>
    %10 = arith.shrui %8, %9 : vector<8x128xi32>
    %11 = arith.xori %8, %10 : vector<8x128xi32>
    %c2146121005_i32 = arith.constant 2146121005 : i32
    %12 = vector.broadcast %c2146121005_i32 : i32 to vector<8x128xi32>
    %13 = arith.muli %11, %12 : vector<8x128xi32>
    %c15_i32 = arith.constant 15 : i32
    %14 = vector.broadcast %c15_i32 : i32 to vector<8x128xi32>
    %15 = arith.shrui %13, %14 : vector<8x128xi32>
    %16 = arith.xori %13, %15 : vector<8x128xi32>
    %c-2073254261_i32 = arith.constant -2073254261 : i32
    %17 = vector.broadcast %c-2073254261_i32 : i32 to vector<8x128xi32>
    %18 = arith.muli %16, %17 : vector<8x128xi32>
    %c16_i32_0 = arith.constant 16 : i32
    %19 = vector.broadcast %c16_i32_0 : i32 to vector<8x128xi32>
    %20 = arith.shrui %18, %19 : vector<8x128xi32>
    %21 = arith.xori %18, %20 : vector<8x128xi32>
    %c9_i32 = arith.constant 9 : i32
    %22 = vector.broadcast %c9_i32 : i32 to vector<8x128xi32>
    %23 = arith.shrui %21, %22 : vector<8x128xi32>
    %24 = arith.sitofp %23 : vector<8x128xi32> to vector<8x128xf32>
    %cst = arith.constant 1.1920929E-7 : f32
    %25 = vector.broadcast %cst : f32 to vector<8x128xf32>
    %26 = arith.mulf %24, %25 : vector<8x128xf32>
    %c0_1 = arith.constant 0 : index
    %c0_2 = arith.constant 0 : index
    %27 = vector.load %arg1[%c0_1, %c0_2] : memref<8x128xf32, #tpu.memory_space<vmem>>, vector<8x128xf32>
    tpu.vector_store %arg1[%c0_1, %c0_2], %26 {strides = array<i32>} : memref<8x128xf32, #tpu.memory_space<vmem>>, vector<8x128xf32>,
    return
  }
}

</mosaic_0001>

<llo_original>
// kernel: tpu_custom_call.1
$region0: #{tpu_custom_call.1}
  #allocation0 [shape = 'u32[]', space=smem, size = 0x4, offset = 0x4, fixed_abs, tag = 'smem constant byte address 0x4 - core index']
  #allocation1 [shape = 'u32[144,128]{1,0:T(1,128)}', space=vmem, size = 0x12000, scoped, tag = 'internal scratch']
  #allocation2 [shape = 's32[1]{0:T(128)S(6)}', space=smem, size = 0x200, scoped, tag = 'scoped memory for tpu_custom_call.1']
  %s0 = inlined_call_operand.<no memory space> [shape: s32[1], index: 0, kind: input, shape index: {}]
  %s1 = inlined_call_operand.hbm [shape: f32[8,128], index: 1, kind: output, shape index: {}]
  %s2 = sld [smem:[#allocation0]]
  $region14: #{tpu_custom_call.1} parent=0
    _
  %s4 = ssub.s32 1, %s2
  %s5 = scalar_select 0, %s4, %s2
  %6 = sst [smem:[#allocation2]] %s0
  $region1: #{tpu_custom_call.1} parent=0
    #allocation3 [shape = 'u8[4096]{0}', space=vmem, size = 0x1000, scoped, tag = 'output window, operand 0, single buffered']
    #allocation4 [shape = 's32[1]{0}', space=sflag, size = 0x4, scoped, tag = 'scoped memory for tpu_custom_call.1']
    %7 = vsyncpa [#allocation4], 0
    // Predicated region
    $region2: #{tpu_custom_call.1} parent=1 // pred_check
      _
    $region3: #{tpu_custom_call.1} parent=1 // pred_check_branch
      %9 = sbr.rel (0) target = $region5
    $region4: #{tpu_custom_call.1} parent=1 // pred_region
      _
    $region5: #{tpu_custom_call.1} parent=1 // pred_fallthru
      _
    %s10 = sld [smem:[#allocation2]]
    %v11 = vlaneseq
    %v12 = vshrl.u32 %v11, 7
    %v13 = vlaneseq
    %v14 = vand.u32 %v13, 127
    %v15 = vmul.u32 %v12, 128
    %v16 = vadd.s32 %v15, %v14
    %s17 = smul.u32 %s10, 7919
    %v18 = vstv %s17
    %v19 = vadd.s32 %v16, %v18
    %v20 = vshrl.u32 %v19, 16
    %v21 = vxor.u32 %v19, %v20
    %v22 = vmul.u32 %v21, 2146121005
    %v23 = vshrl.u32 %v22, 15
    %v24 = vxor.u32 %v22, %v23
    %v25 = vmul.u32 %v24, 2221713035
    %v26 = vshrl.u32 %v25, 16
    %v27 = vxor.u32 %v25, %v26
    %v28 = vshrl.u32 %v27, 9
    %v29 = vcvt.s32.f32 %v28
    %v30 = vmul.f32 %v29, 1.1920929e-07
    %31 = vst [vmem:[#allocation3] sm:$0xff] %v30
    // Predicated region
    $region6: #{tpu_custom_call.1} parent=1 // pred_check
      _
    $region7: #{tpu_custom_call.1} parent=1 // pred_check_branch
      %33 = sbr.rel (0) target = $region9
    $region8: #{tpu_custom_call.1} parent=1 // pred_region
      %s35 = ssub.s32 128, 128
      %36 = vsyncadd [#allocation4], %s35
      %s38 = sshll.u32 [#allocation3], 4
      %s39 = int_to_ptr.vmem [resolvable:$true] %s38
      %41 = dma.vmem_to_hbm [thread:$0]  %s39, 128, %s1, [#allocation4]
    $region9: #{tpu_custom_call.1} parent=1 // pred_fallthru
      _
    // Predicated region
    $region10: #{tpu_custom_call.1} parent=1 // pred_check
      _
    $region11: #{tpu_custom_call.1} parent=1 // pred_check_branch
      %43 = sbr.rel (0) target = $region13
    $region12: #{tpu_custom_call.1} parent=1 // pred_region
      %44 = dma.done [#allocation4], 128
    $region13: #{tpu_custom_call.1} parent=1 // pred_fallthru
      _
    %45 = vsyncpa [#allocation4], 1

</llo_original>
